<compile_context>
chip_gen: v6e
topology: v6e:2x2x1
jax: 0.10.0
libtpu: 0.0.40
codegen_flags: <defaults>
</compile_context>

<pallas_src>
import jax
import jax.numpy as jnp
from jax import lax
from jax.experimental import pallas as pl
from jax.experimental.pallas import tpu as pltpu

LN_EPS = 1e-5  # PyTorch nn.LayerNorm default


def _arc_decoder_kernel(idx_ref, ztbd_ref, wbd_ref, bbd_ref, wbt_ref,
                        gamma_ref, beta_ref, out_ref):
    """One tile of `arc_tile` arcs; arcs live on the lane axis.

    idx_ref  : (2, TA)       int32  arc endpoints (row 0 -> lin1, row 1 -> lin2)
    ztbd_ref : (2H, 2*Np)    f32    block-diag [[z_norm^T, 0], [0, z_norm^T]]
    wbd_ref  : (2H, 2H)      f32    block-diag [[W1, 0], [0, W2]] (torch (out,in))
    bbd_ref  : (2H, 1)       f32    stacked [b1; b2]
    wbt_ref  : (H, H)        f32    bilinear weight W[0]^T
    gamma/beta : (H, 1)      f32    LayerNorm affine (shared by both branches)
    out_ref  : (1, TA)       f32    arc scores (bilinear bias added in wrapper)
    """
    two_np = ztbd_ref.shape[1]
    n_pad = two_np // 2
    ta = idx_ref.shape[1]
    H = wbt_ref.shape[0]

    idx = idx_ref[...]                                            # (2, TA)
    row_ids = lax.broadcasted_iota(jnp.int32, (two_np, ta), 0)

    # Fused one-hot gather on the MXU: row r of the one-hot selects node r for
    # the lin1 half (r < Np) and node r - Np for the lin2 half (r >= Np).  The
    # two targets can never collide (idx < Np <= idx2 + Np), so a single OR'ed
    # compare builds both gathers at once.
    onehot = jnp.where(
        (row_ids == idx[0:1, :]) | (row_ids == idx[1:2, :] + n_pad), 1.0, 0.0)
    x12 = jnp.dot(ztbd_ref[...], onehot,
                  preferred_element_type=jnp.float32)             # (2H, TA)

    # Fused block-diag linear + bias + relu: rows 0:H = W1 @ x1 + b1,
    # rows H:2H = W2 @ x2 + b2 — one MXU sequence instead of two.
    # TODO(synk): for production H (2H > one MXU pass), split back into two
    # separate dots and cast the (H,H) weights / activations to bf16 (keep f32
    # accumulation and LayerNorm) — kept f32 here for exact parity at H=32.
    h12 = jnp.dot(wbd_ref[...], x12,
                  preferred_element_type=jnp.float32) + bbd_ref[...]
    h12 = jnp.maximum(h12, 0.0)                                   # (2H, TA)

    gamma = gamma_ref[...]                                        # (H, 1)
    beta = beta_ref[...]                                          # (H, 1)

    def layernorm(h):  # h: (H, TA); hidden dim on sublanes -> cheap sublane reduce
        # TODO(synk): if a profile shows the XLU binding, replace these axis-0
        # reductions with ones-row matmuls to move them onto the idle MXU.
        mu = jnp.mean(h, axis=0, keepdims=True)                   # (1, TA)
        var = jnp.mean((h - mu) * (h - mu), axis=0, keepdims=True)
        return (h - mu) * lax.rsqrt(var + LN_EPS) * gamma + beta

    # TODO(synk): dropout is identity here (eval mode); train-mode dropout would
    # use pltpu.prng_random_bits.
    h1 = layernorm(h12[0:H, :])                                   # (H, TA)
    h2 = layernorm(h12[H:, :])                                    # (H, TA)

    # nn.Bilinear(H, H, 1): score[a] = sum_ij h1[i,a] * W[0,i,j] * h2[j,a]
    t = jnp.dot(wbt_ref[...], h1, preferred_element_type=jnp.float32)  # (H, TA)
    out_ref[...] = jnp.sum(t * h2, axis=0, keepdims=True)              # (1, TA)


def _pick_arc_tile(A, arc_tile):
    """Lane-dense tile (multiple of 128); keeps the grid >= 2 steps when A allows
    it so v7x's two TensorCores both get work."""
    a128 = -(-A // 128) * 128
    if a128 < 256:
        return 128
    half = -(-(a128 // 2) // 128) * 128            # ceil(a128/2) rounded to 128
    return max(128, min(arc_tile, half))


def arc_decoder_forward(z, pot_arcs, params, *, arc_tile=1024):
    """z: (N, H) float32, pot_arcs: (A, 2) ints indexing [0, N]. Returns (A,) f32."""
    H = z.shape[-1]
    A = pot_arcs.shape[0]
    assert arc_tile % 128 == 0, "arc_tile must be lane-dense (multiple of 128)"

    # ---- cheap O(N*H) per-call glue in plain JAX ----
    # root feature, vstack, and the FIRST LayerNorm done once (LN is per-row so
    # it commutes with the row gather).
    root_feat = jnp.ones((1, 1), jnp.float32) @ params["root_w"].T + params["root_b"]
    z_full = jnp.concatenate([root_feat, z.astype(jnp.float32)], axis=0)  # (N+1, H)
    mu = jnp.mean(z_full, axis=-1, keepdims=True)
    var = jnp.mean((z_full - mu) ** 2, axis=-1, keepdims=True)
    z_norm = (z_full - mu) * lax.rsqrt(var + LN_EPS) * params["ln_g"] + params["ln_b"]

    n_rows = z_full.shape[0]
    n_pad = ((n_rows + 7) // 8) * 8                 # padded rows never selected
    zt = z_norm.T.astype(jnp.float32)               # (H, n_rows)
    # block-diag node table for the fused gather: (2H, 2*Np)
    ztbd = jnp.zeros((2 * H, 2 * n_pad), jnp.float32)
    ztbd = ztbd.at[:H, :n_rows].set(zt)
    ztbd = ztbd.at[H:, n_pad:n_pad + n_rows].set(zt)

    # torch Linear weights are (out, in); in the transposed layout they are used
    # as-is (yT = W @ xT + b).  lin1/lin2 fused into a block-diagonal weight.
    w1 = params["lin1_w"].astype(jnp.float32)
    w2 = params["lin2_w"].astype(jnp.float32)
    wbd = jnp.zeros((2 * H, 2 * H), jnp.float32)
    wbd = wbd.at[:H, :H].set(w1)
    wbd = wbd.at[H:, H:].set(w2)
    bbd = jnp.concatenate([params["lin1_b"].reshape(H, 1),
                           params["lin2_b"].reshape(H, 1)], axis=0).astype(jnp.float32)
    wbt = params["bil_w"][0].T.astype(jnp.float32)
    gamma = params["ln_g"].reshape(H, 1).astype(jnp.float32)
    beta = params["ln_b"].reshape(H, 1).astype(jnp.float32)

    # pad arcs to a multiple of the tile (padded arcs gather row 0, sliced off below)
    tile = _pick_arc_tile(A, arc_tile)
    a_pad = ((A + tile - 1) // tile) * tile
    idx_t = jnp.zeros((2, a_pad), jnp.int32).at[:, :A].set(pot_arcs.astype(jnp.int32).T)
    num_tiles = a_pad // tile

    # explicit scoped-VMEM budget so large arc_tile sweeps aren't capped by the
    # 16/32 MiB defaults (clamped to v7x's 64 MiB physical VMEM).
    vmem_est = 4 * (
        2 * 2 * tile                      # idx (double-buffered)
        + 2 * tile                        # out (double-buffered)
        + (2 * H) * (2 * n_pad)           # ztbd
        + (2 * H) * (2 * H) + H * H       # weights
        + 4 * (2 * H)                     # biases / affine
        + (2 * n_pad) * tile              # one-hot
        + 6 * (2 * H) * tile              # x12/h12/h1/h2/t + slack
    )
    vmem_limit = int(min(64 * 1024 * 1024, max(32 * 1024 * 1024, 2 * vmem_est)))

    full = lambda i: (0, 0)
    per_tile = lambda i: (0, i)
    # TODO(synk): for production H, mark the constant-index blocks below with
    # pipeline_mode=pl.Buffered(1) to drop their second pipeline buffer
    # (irrelevant at H=32, big VMEM headroom win at H~1024 on v7x/v5e).
    out = pl.pallas_call(
        _arc_decoder_kernel,
        out_shape=jax.ShapeDtypeStruct((1, a_pad), jnp.float32),  # lane-dense scores
        grid_spec=pltpu.PrefetchScalarGridSpec(
            num_scalar_prefetch=0,
            grid=(num_tiles,),
            in_specs=[
                pl.BlockSpec((2, tile), per_tile),          # arc endpoint indices
                pl.BlockSpec((2 * H, 2 * n_pad), full),     # block-diag z_norm^T
                pl.BlockSpec((2 * H, 2 * H), full),         # block-diag [W1, W2]
                pl.BlockSpec((2 * H, 1), full),             # stacked [b1; b2]
                pl.BlockSpec((H, H), full),                 # bilinear W[0]^T
                pl.BlockSpec((H, 1), full),                 # LN gamma
                pl.BlockSpec((H, 1), full),                 # LN beta
            ],
            out_specs=pl.BlockSpec((1, tile), per_tile),
        ),
        compiler_params=pltpu.CompilerParams(
            dimension_semantics=("parallel",),
            vmem_limit_bytes=vmem_limit),
    )(idx_t, ztbd, wbd, bbd, wbt, gamma, beta)

    # bilinear bias folded outside the kernel; drop the padded arcs.
    return out.reshape(-1)[:A] + params["bil_b"]


def _reference_forward(z, pot_arcs, params):
    """Plain-JAX reference mirroring the PyTorch forward (eval mode)."""
    def ln(x):
        mu = jnp.mean(x, axis=-1, keepdims=True)
        var = jnp.mean((x - mu) ** 2, axis=-1, keepdims=True)
        return (x - mu) / jnp.sqrt(var + LN_EPS) * params["ln_g"] + params["ln_b"]

    root_feat = jnp.ones((1, 1)) @ params["root_w"].T + params["root_b"]
    zf = ln(jnp.concatenate([root_feat, z], axis=0))
    i1 = zf[pot_arcs[:, 0]]
    i2 = zf[pot_arcs[:, 1]]
    i1 = ln(jnp.maximum(i1 @ params["lin1_w"].T + params["lin1_b"], 0.0))
    i2 = ln(jnp.maximum(i2 @ params["lin2_w"].T + params["lin2_b"], 0.0))
    s = jnp.einsum("ai,oij,aj->ao", i1, params["bil_w"], i2) + params["bil_b"]
    return s.reshape(-1)


def make_params(key, H):
    ks = jax.random.split(key, 8)
    u = lambda k, shape, fan_in: jax.random.uniform(
        k, shape, jnp.float32, -1.0 / jnp.sqrt(fan_in), 1.0 / jnp.sqrt(fan_in))
    return {
        "root_w": u(ks[0], (H, 1), 1),      # nn.Linear(1, H)
        "root_b": u(ks[1], (H,), 1),
        "lin1_w": u(ks[2], (H, H), H),      # nn.Linear(H, H)
        "lin1_b": u(ks[3], (H,), H),
        "lin2_w": u(ks[4], (H, H), H),      # nn.Linear(H, H)
        "lin2_b": u(ks[5], (H,), H),
        "bil_w": u(ks[6], (1, H, H), H),    # nn.Bilinear(H, H, 1)
        "bil_b": u(ks[7], (1,), H),
        "ln_g": jnp.ones((H,), jnp.float32),
        "ln_b": jnp.zeros((H,), jnp.float32),
    }


if __name__ == "__main__":
    H = 32      # hidden_channels
    N = 8       # sequence length
    A = 300     # potential arcs (tile auto-caps to 256 -> 2 grid steps)

    key = jax.random.PRNGKey(0)
    kz, kp, ka = jax.random.split(key, 3)

    z = jax.random.normal(kz, (N, H), jnp.float32)
    params = make_params(kp, H)
    # pot_arcs index into the root-augmented sequence: [0, N]
    pot_arcs = jax.random.randint(ka, (A, 2), 0, N + 1, jnp.int32)

    out = arc_decoder_forward(z, pot_arcs, params)
    out = jax.block_until_ready(out)

    ref = _reference_forward(z, pot_arcs, params)
    assert out.shape == (A,)
    assert jnp.allclose(out, ref, atol=1e-4, rtol=1e-4), (out, ref)

    print("KERNEL_OK")
</pallas_src>

<mosaic_0001>
module attributes {stable_mosaic.version = 11 : i64} {
  func.func @_arc_decoder_kernel(%arg0: i32, %arg1: memref<2x256xi32, #tpu.memory_space<vmem>>, %arg2: memref<64x32xf32, #tpu.memory_space<vmem>>, %arg3: memref<64x64xf32, #tpu.memory_space<vmem>>, %arg4: memref<64x1xf32, #tpu.memory_space<vmem>>, %arg5: memref<32x32xf32, #tpu.memory_space<vmem>>, %arg6: memref<32x1xf32, #tpu.memory_space<vmem>>, %arg7: memref<32x1xf32, #tpu.memory_space<vmem>>, %arg8: memref<1x256xf32, #tpu.memory_space<vmem>>) attributes {dimension_semantics = [#tpu.dimension_semantics<parallel>], iteration_bounds = array<i64: 2>, scalar_prefetch = 0 : i64, scratch_operands = 0 : i64, tpu.core_type = #tpu.core_type<tc>, window_params = [{transform_indices = @transform_0, window_bounds = array<i64: 2, 256>}, {pipeline_mode = #tpu.pipeline_mode<synchronous>, transform_indices = @transform_1, window_bounds = array<i64: 64, 32>}, {pipeline_mode = #tpu.pipeline_mode<synchronous>, transform_indices = @transform_2, window_bounds = array<i64: 64, 64>}, {pipeline_mode = #tpu.pipeline_mode<synchronous>, transform_indices = @transform_3, window_bounds = array<i64: 64, 1>}, {pipeline_mode = #tpu.pipeline_mode<synchronous>, transform_indices = @transform_4, window_bounds = array<i64: 32, 32>}, {pipeline_mode = #tpu.pipeline_mode<synchronous>, transform_indices = @transform_5, window_bounds = array<i64: 32, 1>}, {pipeline_mode = #tpu.pipeline_mode<synchronous>, transform_indices = @transform_6, window_bounds = array<i64: 32, 1>}, {transform_indices = @transform_7, window_bounds = array<i64: 1, 256>}]} {
    %c0 = arith.constant 0 : index
    %c0_0 = arith.constant 0 : index
    %0 = vector.load %arg1[%c0, %c0_0] : memref<2x256xi32, #tpu.memory_space<vmem>>, vector<2x256xi32>
    %1 = tpu.iota {dimensions = array<i32: 0>} : vector<32x256xi32>
    %2 = vector.extract_strided_slice %0 {offsets = [0, 0], sizes = [1, 256], strides = [1, 1]} : vector<2x256xi32> to vector<1x256xi32>
    %3 = vector.broadcast %2 : vector<1x256xi32> to vector<32x256xi32>
    %4 = arith.cmpi eq, %1, %3 : vector<32x256xi32>
    %5 = vector.extract_strided_slice %0 {offsets = [1, 0], sizes = [1, 256], strides = [1, 1]} : vector<2x256xi32> to vector<1x256xi32>
    %c16_i32 = arith.constant 16 : i32
    %6 = vector.broadcast %c16_i32 : i32 to vector<1x256xi32>
    %7 = arith.addi %5, %6 : vector<1x256xi32>
    %8 = vector.broadcast %7 : vector<1x256xi32> to vector<32x256xi32>
    %9 = arith.cmpi eq, %1, %8 : vector<32x256xi32>
    %10 = arith.ori %4, %9 : vector<32x256xi1>
    %cst = arith.constant 1.000000e+00 : f32
    %cst_1 = arith.constant 0.000000e+00 : f32
    %11 = vector.broadcast %cst : f32 to vector<32x256xf32>
    %12 = vector.broadcast %cst_1 : f32 to vector<32x256xf32>
    %13 = arith.select %10, %11, %12 : vector<32x256xi1>, vector<32x256xf32>
    %c0_2 = arith.constant 0 : index
    %c0_3 = arith.constant 0 : index
    %14 = vector.load %arg2[%c0_2, %c0_3] : memref<64x32xf32, #tpu.memory_space<vmem>>, vector<64x32xf32>
    %cst_4 = arith.constant dense<0.000000e+00> : vector<64x256xf32>
    %15 = tpu.matmul %14, %13, %cst_4 {dimension_numbers = #tpu.dot_dimension_numbers<[1], [0], [0], [1], [0, 0, 1, 1], [], []>} : vector<64x32xf32>, vector<32x256xf32>, vector<64x256xf32> -> vector<64x256xf32>
    %c0_5 = arith.constant 0 : index
    %c0_6 = arith.constant 0 : index
    %16 = vector.load %arg3[%c0_5, %c0_6] : memref<64x64xf32, #tpu.memory_space<vmem>>, vector<64x64xf32>
    %cst_7 = arith.constant dense<0.000000e+00> : vector<64x256xf32>
    %17 = tpu.matmul %16, %15, %cst_7 {dimension_numbers = #tpu.dot_dimension_numbers<[1], [0], [0], [1], [0, 0, 1, 1], [], []>} : vector<64x64xf32>, vector<64x256xf32>, vector<64x256xf32> -> vector<64x256xf32>
    %c0_8 = arith.constant 0 : index
    %c0_9 = arith.constant 0 : index
    %18 = vector.load %arg4[%c0_8, %c0_9] : memref<64x1xf32, #tpu.memory_space<vmem>>, vector<64x1xf32>
    %19 = vector.broadcast %18 : vector<64x1xf32> to vector<64x256xf32>
    %20 = arith.addf %17, %19 : vector<64x256xf32>
    %cst_10 = arith.constant 0.000000e+00 : f32
    %21 = vector.broadcast %cst_10 : f32 to vector<64x256xf32>
    %22 = arith.maximumf %20, %21 : vector<64x256xf32>
    %c0_11 = arith.constant 0 : index
    %c0_12 = arith.constant 0 : index
    %23 = vector.load %arg6[%c0_11, %c0_12] : memref<32x1xf32, #tpu.memory_space<vmem>>, vector<32x1xf32>
    %c0_13 = arith.constant 0 : index
    %c0_14 = arith.constant 0 : index
    %24 = vector.load %arg7[%c0_13, %c0_14] : memref<32x1xf32, #tpu.memory_space<vmem>>, vector<32x1xf32>
    %25 = vector.extract_strided_slice %22 {offsets = [0, 0], sizes = [32, 256], strides = [1, 1]} : vector<64x256xf32> to vector<32x256xf32>
    %cst_15 = arith.constant dense<0.000000e+00> : vector<256xf32>
    %26 = vector.multi_reduction <add>, %25, %cst_15 [0] : vector<32x256xf32> to vector<256xf32>
    %27 = vector.shape_cast %26 : vector<256xf32> to vector<1x256xf32>
    %cst_16 = arith.constant 3.200000e+01 : f32
    %28 = vector.broadcast %cst_16 : f32 to vector<1x256xf32>
    %29 = arith.divf %27, %28 : vector<1x256xf32>
    %30 = vector.broadcast %29 : vector<1x256xf32> to vector<32x256xf32>
    %31 = arith.subf %25, %30 : vector<32x256xf32>
    %32 = vector.broadcast %29 : vector<1x256xf32> to vector<32x256xf32>
    %33 = arith.subf %25, %32 : vector<32x256xf32>
    %34 = arith.mulf %31, %33 : vector<32x256xf32>
    %cst_17 = arith.constant dense<0.000000e+00> : vector<256xf32>
    %35 = vector.multi_reduction <add>, %34, %cst_17 [0] : vector<32x256xf32> to vector<256xf32>
    %36 = vector.shape_cast %35 : vector<256xf32> to vector<1x256xf32>
    %cst_18 = arith.constant 3.200000e+01 : f32
    %37 = vector.broadcast %cst_18 : f32 to vector<1x256xf32>
    %38 = arith.divf %36, %37 : vector<1x256xf32>
    %39 = vector.broadcast %29 : vector<1x256xf32> to vector<32x256xf32>
    %40 = arith.subf %25, %39 : vector<32x256xf32>
    %cst_19 = arith.constant 9.99999974E-6 : f32
    %41 = vector.broadcast %cst_19 : f32 to vector<1x256xf32>
    %42 = arith.addf %38, %41 : vector<1x256xf32>
    %43 = math.rsqrt %42 : vector<1x256xf32>
    %44 = vector.broadcast %43 : vector<1x256xf32> to vector<32x256xf32>
    %45 = arith.mulf %40, %44 : vector<32x256xf32>
    %46 = vector.broadcast %23 : vector<32x1xf32> to vector<32x256xf32>
    %47 = arith.mulf %45, %46 : vector<32x256xf32>
    %48 = vector.broadcast %24 : vector<32x1xf32> to vector<32x256xf32>
    %49 = arith.addf %47, %48 : vector<32x256xf32>
    %50 = vector.extract_strided_slice %22 {offsets = [32, 0], sizes = [32, 256], strides = [1, 1]} : vector<64x256xf32> to vector<32x256xf32>
    %cst_20 = arith.constant dense<0.000000e+00> : vector<256xf32>
    %51 = vector.multi_reduction <add>, %50, %cst_20 [0] : vector<32x256xf32> to vector<256xf32>
    %52 = vector.shape_cast %51 : vector<256xf32> to vector<1x256xf32>
    %cst_21 = arith.constant 3.200000e+01 : f32
    %53 = vector.broadcast %cst_21 : f32 to vector<1x256xf32>
    %54 = arith.divf %52, %53 : vector<1x256xf32>
    %55 = vector.broadcast %54 : vector<1x256xf32> to vector<32x256xf32>
    %56 = arith.subf %50, %55 : vector<32x256xf32>
    %57 = vector.broadcast %54 : vector<1x256xf32> to vector<32x256xf32>
    %58 = arith.subf %50, %57 : vector<32x256xf32>
    %59 = arith.mulf %56, %58 : vector<32x256xf32>
    %cst_22 = arith.constant dense<0.000000e+00> : vector<256xf32>
    %60 = vector.multi_reduction <add>, %59, %cst_22 [0] : vector<32x256xf32> to vector<256xf32>
    %61 = vector.shape_cast %60 : vector<256xf32> to vector<1x256xf32>
    %cst_23 = arith.constant 3.200000e+01 : f32
    %62 = vector.broadcast %cst_23 : f32 to vector<1x256xf32>
    %63 = arith.divf %61, %62 : vector<1x256xf32>
    %64 = vector.broadcast %54 : vector<1x256xf32> to vector<32x256xf32>
    %65 = arith.subf %50, %64 : vector<32x256xf32>
    %cst_24 = arith.constant 9.99999974E-6 : f32
    %66 = vector.broadcast %cst_24 : f32 to vector<1x256xf32>
    %67 = arith.addf %63, %66 : vector<1x256xf32>
    %68 = math.rsqrt %67 : vector<1x256xf32>
    %69 = vector.broadcast %68 : vector<1x256xf32> to vector<32x256xf32>
    %70 = arith.mulf %65, %69 : vector<32x256xf32>
    %71 = vector.broadcast %23 : vector<32x1xf32> to vector<32x256xf32>
    %72 = arith.mulf %70, %71 : vector<32x256xf32>
    %73 = vector.broadcast %24 : vector<32x1xf32> to vector<32x256xf32>
    %74 = arith.addf %72, %73 : vector<32x256xf32>
    %c0_25 = arith.constant 0 : index
    %c0_26 = arith.constant 0 : index
    %75 = vector.load %arg5[%c0_25, %c0_26] : memref<32x32xf32, #tpu.memory_space<vmem>>, vector<32x32xf32>
    %cst_27 = arith.constant dense<0.000000e+00> : vector<32x256xf32>
    %76 = tpu.matmul %75, %49, %cst_27 {dimension_numbers = #tpu.dot_dimension_numbers<[1], [0], [0], [1], [0, 0, 1, 1], [], []>} : vector<32x32xf32>, vector<32x256xf32>, vector<32x256xf32> -> vector<32x256xf32>
    %77 = arith.mulf %76, %74 : vector<32x256xf32>
    %cst_28 = arith.constant dense<0.000000e+00> : vector<256xf32>
    %78 = vector.multi_reduction <add>, %77, %cst_28 [0] : vector<32x256xf32> to vector<256xf32>
    %79 = vector.shape_cast %78 : vector<256xf32> to vector<1x256xf32>
    %c0_29 = arith.constant 0 : index
    %c0_30 = arith.constant 0 : index
    %80 = vector.load %arg8[%c0_29, %c0_30] : memref<1x256xf32, #tpu.memory_space<vmem>>, vector<1x256xf32>
    tpu.vector_store %arg8[%c0_29, %c0_30], %79 {strides = array<i32>} : memref<1x256xf32, #tpu.memory_space<vmem>>, vector<1x256xf32>,
    return
  }
  func.func @transform_0(%arg0: i32) -> (i32, i32) {
    %c0_i32 = arith.constant 0 : i32
    %c0_i32_0 = arith.constant 0 : i32
    return %c0_i32, %arg0 : i32, i32
  }
  func.func @transform_1(%arg0: i32) -> (i32, i32) {
    %c0_i32 = arith.constant 0 : i32
    %c0_i32_0 = arith.constant 0 : i32
    %c0_i32_1 = arith.constant 0 : i32
    return %c0_i32, %c0_i32_0 : i32, i32
  }
  func.func @transform_2(%arg0: i32) -> (i32, i32) {
    %c0_i32 = arith.constant 0 : i32
    %c0_i32_0 = arith.constant 0 : i32
    %c0_i32_1 = arith.constant 0 : i32
    return %c0_i32, %c0_i32_0 : i32, i32
  }
  func.func @transform_3(%arg0: i32) -> (i32, i32) {
    %c0_i32 = arith.constant 0 : i32
    %c0_i32_0 = arith.constant 0 : i32
    %c0_i32_1 = arith.constant 0 : i32
    return %c0_i32, %c0_i32_0 : i32, i32
  }
  func.func @transform_4(%arg0: i32) -> (i32, i32) {
    %c0_i32 = arith.constant 0 : i32
    %c0_i32_0 = arith.constant 0 : i32
    %c0_i32_1 = arith.constant 0 : i32
    return %c0_i32, %c0_i32_0 : i32, i32
  }
  func.func @transform_5(%arg0: i32) -> (i32, i32) {
    %c0_i32 = arith.constant 0 : i32
    %c0_i32_0 = arith.constant 0 : i32
    %c0_i32_1 = arith.constant 0 : i32
    return %c0_i32, %c0_i32_0 : i32, i32
  }
  func.func @transform_6(%arg0: i32) -> (i32, i32) {
    %c0_i32 = arith.constant 0 : i32
    %c0_i32_0 = arith.constant 0 : i32
    %c0_i32_1 = arith.constant 0 : i32
    return %c0_i32, %c0_i32_0 : i32, i32
  }
  func.func @transform_7(%arg0: i32) -> (i32, i32) {
    %c0_i32 = arith.constant 0 : i32
    %c0_i32_0 = arith.constant 0 : i32
    return %c0_i32, %arg0 : i32, i32
  }
}

</mosaic_0001>

<llo_original>
// kernel: tpu_custom_call.1
$region0: #{tpu_custom_call.1}
  #allocation0 [shape = 'u32[]', space=smem, size = 0x4, offset = 0x4, fixed_abs, tag = 'smem constant byte address 0x4 - core index']
  #allocation1 [shape = 'u32[144,128]{1,0:T(1,128)}', space=vmem, size = 0x12000, scoped, tag = 'internal scratch']
  %s0 = inlined_call_operand.vmem [shape: s32[2,512], index: 0, kind: input, shape index: {}]
  %s1 = inlined_call_operand.vmem [shape: f32[64,32], index: 1, kind: input, shape index: {}]
  %s2 = inlined_call_operand.vmem [shape: f32[64,64], index: 2, kind: input, shape index: {}]
  %s3 = inlined_call_operand.vmem [shape: f32[64,1], index: 3, kind: input, shape index: {}]
  %s4 = inlined_call_operand.vmem [shape: f32[32,32], index: 4, kind: input, shape index: {}]
  %s5 = inlined_call_operand.vmem [shape: f32[32,1], index: 5, kind: input, shape index: {}]
  %s6 = inlined_call_operand.vmem [shape: f32[32,1], index: 6, kind: input, shape index: {}]
  %s7 = inlined_call_operand.hbm [shape: f32[1,512], index: 7, kind: output, shape index: {}]
  %s8 = sld [smem:[#allocation0]]
  $region61: #{tpu_custom_call.1} parent=0
    _
  %s10 = ssub.s32 1, %s8
  %s11 = scalar_select 0, %s10, %s8
  $region1: #{tpu_custom_call.1} parent=0
    #allocation2 [shape = 'u8[2048]{0}', space=vmem, size = 0x800, scoped, tag = 'output window, operand 0']
    #allocation3 [shape = 's32[2]{0}', space=sflag, size = 0x8, scoped, tag = 'scoped memory for tpu_custom_call.1']
    %12 = vsyncpa [#allocation3], 0
    %s13 = scalar_lea.sflag [#allocation3], 1
    %14 = vsyncpa %s13, 0
    loop: start=0, step=1, limit=4
    $region2: #{tpu_custom_call.1} parent=1 // loop_pre_header
      _
    $region3: #{tpu_custom_call.1} parent=1 // loop_header
      %s16 = sphi 0, %s20
      %p17 = scmp.ge.s32.totalorder %s16, 4
      %s26 = sphi 0, %s28
      %s29 = sphi 0, %s26
      %s30 = sphi 0, %s29
      %s46 = sphi 0, %s30
      %s50 = sphi 0, %s50
      %s52 = sphi 0, %s50
      %s53 = sphi 0, %s52
      %s67 = sphi 0, %s53
      %s71 = sphi 0, %s71
      %s73 = sphi 0, %s71
      %s74 = sphi 0, %s73
      %s88 = sphi 0, %s74
      %s92 = sphi 0, %s92
      %s94 = sphi 0, %s92
      %s95 = sphi 0, %s94
      %s109 = sphi 0, %s95
      %s113 = sphi 0, %s113
      %s115 = sphi 0, %s113
      %s116 = sphi 0, %s115
      %s130 = sphi 0, %s116
      %s134 = sphi 0, %s134
      %s136 = sphi 0, %s134
      %s137 = sphi 0, %s136
      %s151 = sphi 0, %s137
      %s155 = sphi 0, %s155
      %s157 = sphi 0, %s155
      %s158 = sphi 0, %s157
      %s172 = sphi 0, %s158
      %s178 = sphi 0, %s180
      %s181 = sphi 0, %s178
      %s182 = sphi 0, %s181
      %s198 = sphi 0, %s182
    $region4: #{tpu_custom_call.1} parent=1 // loop_header_branch
      %19 = sbr.rel (%p17) target = $region8
    $region5: #{tpu_custom_call.1} parent=1 // loop_body
      %s21 = ssub.s32 %s16, 1
      %s22 = ssub.s32 %s16, 2
      %s23 = sadd.s32 %s16, 1
      %s24 = ssub.s32 %s16, %s23
      %p25 = scmp.eq.s32.totalorder %s24, 0
      %s27 = sadd.s32 %s26, 1
      %s28 = scalar_select %p25, %s26, %s27
      %p31 = pneg %p25
      %p32 = scmp.eq.s32.totalorder %s16, 1
      %p33 = por %p31, %p32
      %p34 = scmp.ne.s32.totalorder %s26, %s29
      %p35 = scmp.eq.s32.totalorder %s16, 0
      %p36 = por %p34, %p35
      %p37 = scmp.ne.s32.totalorder %s26, %s29
      %p38 = scmp.eq.s32.totalorder %s21, 1
      %p39 = por %p37, %p38
      %p40 = scmp.ne.s32.totalorder %s29, %s30
      %p41 = scmp.eq.s32.totalorder %s21, 0
      %p42 = por %p40, %p41
      %p43 = scmp.ne.s32.totalorder %s29, %s30
      %p44 = scmp.eq.s32.totalorder %s22, 1
      %p45 = por %p43, %p44
      %p47 = scmp.ne.s32.totalorder %s30, %s46
      %p48 = scmp.eq.s32.totalorder %s22, 0
      %p49 = por %p47, %p48
      %s51 = sadd.s32 %s50, 1
      %p54 = scmp.eq.s32.totalorder %s16, 1
      %p55 = scmp.ne.s32.totalorder %s50, %s52
      %p56 = scmp.eq.s32.totalorder %s16, 0
      %p57 = por %p55, %p56
      %p58 = scmp.ne.s32.totalorder %s50, %s52
      %p59 = scmp.eq.s32.totalorder %s21, 1
      %p60 = por %p58, %p59
      %p61 = scmp.ne.s32.totalorder %s52, %s53
      %p62 = scmp.eq.s32.totalorder %s21, 0
      %p63 = por %p61, %p62
      %p64 = scmp.ne.s32.totalorder %s52, %s53
      %p65 = scmp.eq.s32.totalorder %s22, 1
      %p66 = por %p64, %p65
      %p68 = scmp.ne.s32.totalorder %s53, %s67
      %p69 = scmp.eq.s32.totalorder %s22, 0
      %p70 = por %p68, %p69
      %s72 = sadd.s32 %s71, 1
      %p75 = scmp.eq.s32.totalorder %s16, 1
      %p76 = scmp.ne.s32.totalorder %s71, %s73
      %p77 = scmp.eq.s32.totalorder %s16, 0
      %p78 = por %p76, %p77
      %p79 = scmp.ne.s32.totalorder %s71, %s73
      %p80 = scmp.eq.s32.totalorder %s21, 1
      %p81 = por %p79, %p80
      %p82 = scmp.ne.s32.totalorder %s73, %s74
      %p83 = scmp.eq.s32.totalorder %s21, 0
      %p84 = por %p82, %p83
      %p85 = scmp.ne.s32.totalorder %s73, %s74
      %p86 = scmp.eq.s32.totalorder %s22, 1
      %p87 = por %p85, %p86
      %p89 = scmp.ne.s32.totalorder %s74, %s88
      %p90 = scmp.eq.s32.totalorder %s22, 0
      %p91 = por %p89, %p90
      %s93 = sadd.s32 %s92, 1
      %p96 = scmp.eq.s32.totalorder %s16, 1
      %p97 = scmp.ne.s32.totalorder %s92, %s94
      %p98 = scmp.eq.s32.totalorder %s16, 0
      %p99 = por %p97, %p98
      %p100 = scmp.ne.s32.totalorder %s92, %s94
      %p101 = scmp.eq.s32.totalorder %s21, 1
      %p102 = por %p100, %p101
      %p103 = scmp.ne.s32.totalorder %s94, %s95
      %p104 = scmp.eq.s32.totalorder %s21, 0
      %p105 = por %p103, %p104
      %p106 = scmp.ne.s32.totalorder %s94, %s95
      %p107 = scmp.eq.s32.totalorder %s22, 1
      %p108 = por %p106, %p107
      %p110 = scmp.ne.s32.totalorder %s95, %s109
      %p111 = scmp.eq.s32.totalorder %s22, 0
      %p112 = por %p110, %p111
      %s114 = sadd.s32 %s113, 1
      %p117 = scmp.eq.s32.totalorder %s16, 1
      %p118 = scmp.ne.s32.totalorder %s113, %s115
      %p119 = scmp.eq.s32.totalorder %s16, 0
      %p120 = por %p118, %p119
      %p121 = scmp.ne.s32.totalorder %s113, %s115
      %p122 = scmp.eq.s32.totalorder %s21, 1
      %p123 = por %p121, %p122
      %p124 = scmp.ne.s32.totalorder %s115, %s116
      %p125 = scmp.eq.s32.totalorder %s21, 0
      %p126 = por %p124, %p125
      %p127 = scmp.ne.s32.totalorder %s115, %s116
      %p128 = scmp.eq.s32.totalorder %s22, 1
      %p129 = por %p127, %p128
      %p131 = scmp.ne.s32.totalorder %s116, %s130
      %p132 = scmp.eq.s32.totalorder %s22, 0
      %p133 = por %p131, %p132
      %s135 = sadd.s32 %s134, 1
      %p138 = scmp.eq.s32.totalorder %s16, 1
      %p139 = scmp.ne.s32.totalorder %s134, %s136
      %p140 = scmp.eq.s32.totalorder %s16, 0
      %p141 = por %p139, %p140
      %p142 = scmp.ne.s32.totalorder %s134, %s136
      %p143 = scmp.eq.s32.totalorder %s21, 1
      %p144 = por %p142, %p143
      %p145 = scmp.ne.s32.totalorder %s136, %s137
      %p146 = scmp.eq.s32.totalorder %s21, 0
      %p147 = por %p145, %p146
      %p148 = scmp.ne.s32.totalorder %s136, %s137
      %p149 = scmp.eq.s32.totalorder %s22, 1
      %p150 = por %p148, %p149
      %p152 = scmp.ne.s32.totalorder %s137, %s151
      %p153 = scmp.eq.s32.totalorder %s22, 0
      %p154 = por %p152, %p153
      %s156 = sadd.s32 %s155, 1
      %p159 = scmp.eq.s32.totalorder %s16, 1
      %p160 = scmp.ne.s32.totalorder %s155, %s157
      %p161 = scmp.eq.s32.totalorder %s16, 0
      %p162 = por %p160, %p161
      %p163 = scmp.ne.s32.totalorder %s155, %s157
      %p164 = scmp.eq.s32.totalorder %s21, 1
      %p165 = por %p163, %p164
      %p166 = scmp.ne.s32.totalorder %s157, %s158
      %p167 = scmp.eq.s32.totalorder %s21, 0
      %p168 = por %p166, %p167
      %p169 = scmp.ne.s32.totalorder %s157, %s158
      %p170 = scmp.eq.s32.totalorder %s22, 1
      %p171 = por %p169, %p170
      %p173 = scmp.ne.s32.totalorder %s158, %s172
      %p174 = scmp.eq.s32.totalorder %s22, 0
      %p175 = por %p173, %p174
      %s176 = ssub.s32 %s16, %s23
      %p177 = scmp.eq.s32.totalorder %s176, 0
      %s179 = sadd.s32 %s178, 1
      %s180 = scalar_select %p177, %s178, %s179
      %p183 = pneg %p177
      %p184 = scmp.eq.s32.totalorder %s16, 1
      %p185 = por %p183, %p184
      %p186 = scmp.ne.s32.totalorder %s178, %s181
      %p187 = scmp.eq.s32.totalorder %s16, 0
      %p188 = por %p186, %p187
      %p189 = scmp.ne.s32.totalorder %s178, %s181
      %p190 = scmp.eq.s32.totalorder %s21, 1
      %p191 = por %p189, %p190
      %p192 = scmp.ne.s32.totalorder %s181, %s182
      %p193 = scmp.eq.s32.totalorder %s21, 0
      %p194 = por %p192, %p193
      %p195 = scmp.ne.s32.totalorder %s181, %s182
      %p196 = scmp.eq.s32.totalorder %s22, 1
      %p197 = por %p195, %p196
      %p199 = scmp.ne.s32.totalorder %s182, %s198
      %p200 = scmp.eq.s32.totalorder %s22, 0
      %p201 = por %p199, %p200
      %p202 = scmp.le.s32.totalorder 1, %s16
      %p203 = scmp.lt.s32.totalorder %s16, 3
      %p204 = pnand %p202, %p203
      %p205 = pneg %p204
      // Predicated region
      $region9: #{tpu_custom_call.1} parent=5 // pred_check
        _
      $region10: #{tpu_custom_call.1} parent=5 // pred_check_branch
        %207 = sbr.rel (%p204) target = $region12
      $region11: #{tpu_custom_call.1} parent=5 // pred_region
        %s208 = ssub.s32 %s16, 1
        // Predicated region
        $region13: #{tpu_custom_call.1} parent=11 // pred_check
          %p209 = pneg %p63
        $region14: #{tpu_custom_call.1} parent=11 // pred_check_branch
          %211 = sbr.rel (%p209) target = $region16
        $region15: #{tpu_custom_call.1} parent=11 // pred_region
          _
        $region16: #{tpu_custom_call.1} parent=11 // pred_fallthru
          _
        // Predicated region
        $region17: #{tpu_custom_call.1} parent=11 // pred_check
          %p212 = pneg %p84
        $region18: #{tpu_custom_call.1} parent=11 // pred_check_branch
          %214 = sbr.rel (%p212) target = $region20
        $region19: #{tpu_custom_call.1} parent=11 // pred_region
          _
        $region20: #{tpu_custom_call.1} parent=11 // pred_fallthru
          _
        // Predicated region
        $region21: #{tpu_custom_call.1} parent=11 // pred_check
          %p215 = pneg %p105
        $region22: #{tpu_custom_call.1} parent=11 // pred_check_branch
          %217 = sbr.rel (%p215) target = $region24
        $region23: #{tpu_custom_call.1} parent=11 // pred_region
          _
        $region24: #{tpu_custom_call.1} parent=11 // pred_fallthru
          _
        // Predicated region
        $region25: #{tpu_custom_call.1} parent=11 // pred_check
          %p218 = pneg %p126
        $region26: #{tpu_custom_call.1} parent=11 // pred_check_branch
          %220 = sbr.rel (%p218) target = $region28
        $region27: #{tpu_custom_call.1} parent=11 // pred_region
          _
        $region28: #{tpu_custom_call.1} parent=11 // pred_fallthru
          _
        // Predicated region
        $region29: #{tpu_custom_call.1} parent=11 // pred_check
          %p221 = pneg %p147
        $region30: #{tpu_custom_call.1} parent=11 // pred_check_branch
          %223 = sbr.rel (%p221) target = $region32
        $region31: #{tpu_custom_call.1} parent=11 // pred_region
          _
        $region32: #{tpu_custom_call.1} parent=11 // pred_fallthru
          _
        // Predicated region
        $region33: #{tpu_custom_call.1} parent=11 // pred_check
          %p224 = pneg %p168
        $region34: #{tpu_custom_call.1} parent=11 // pred_check_branch
          %226 = sbr.rel (%p224) target = $region36
        $region35: #{tpu_custom_call.1} parent=11 // pred_region
          _
        $region36: #{tpu_custom_call.1} parent=11 // pred_fallthru
          _
      $region12: #{tpu_custom_call.1} parent=5 // pred_fallthru
        _
      %p227 = scmp.lt.s32.totalorder %s16, 2
      // Predicated region
      $region37: #{tpu_custom_call.1} parent=5 // pred_check
        %p228 = pneg %p227
      $region38: #{tpu_custom_call.1} parent=5 // pred_check_branch
        %230 = sbr.rel (%p228) target = $region40
      $region39: #{tpu_custom_call.1} parent=5 // pred_region
        // Predicated region
        $region41: #{tpu_custom_call.1} parent=39 // pred_check
          %p231 = pneg %p36
        $region42: #{tpu_custom_call.1} parent=39 // pred_check_branch
          %233 = sbr.rel (%p231) target = $region44
        $region43: #{tpu_custom_call.1} parent=39 // pred_region
          %s234 = smul.u32 2, %s16
          %p235 = scmp.lt.s32.totalorder %s234, 3
          %s236 = scalar_select %p235, %s234, 3
          %s237 = smul.addr %s236, 2
          %s238 = scalar_lea.vmem %s0, %s237
          %s239 = smul.u32 2, %s16
        $region44: #{tpu_custom_call.1} parent=39 // pred_fallthru
          _
      $region40: #{tpu_custom_call.1} parent=5 // pred_fallthru
        _
      %p240 = scmp.le.s32.totalorder 1, %s16
      %p241 = scmp.lt.s32.totalorder %s16, 3
      %p242 = pnand %p240, %p241
      %p243 = pneg %p242
      // Predicated region
      $region45: #{tpu_custom_call.1} parent=5 // pred_check
        _
      $region46: #{tpu_custom_call.1} parent=5 // pred_check_branch
        %245 = sbr.rel (%p242) target = $region48
      $region47: #{tpu_custom_call.1} parent=5 // pred_region
        %s246 = ssub.s32 %s16, 1
        %s247 = smul.u32 2, %s21
        %p248 = scmp.lt.s32.totalorder %s247, 3
        %s249 = scalar_select %p248, %s247, 3
        %s250 = smul.addr %s249, 2
        %s251 = scalar_lea.vmem %s0, %s250
        %p252 = pneg %p42
        %p253 = pneg %p39
        %p254 = pneg %p63
        %p255 = pneg %p60
        %p256 = pneg %p84
        %p257 = pneg %p81
        %p258 = pneg %p105
        %p259 = pneg %p102
        %p260 = pneg %p126
        %p261 = pneg %p123
        %p262 = pneg %p147
        %p263 = pneg %p144
        %p264 = pneg %p168
        %p265 = pneg %p165
        %p266 = pneg %p194
        %p267 = pneg %p191
        %s268 = sand.u32 %s181, 1
        %s269 = scalar_lea.sflag [#allocation3], %s268
        %s270 = sand.u32 %s181, 1
        %s271 = smul.addr %s270, 2
        %s272 = scalar_lea.vmem [#allocation2], %s271
        %s273 = smul.u32 2, %s21
        %p274 = scmp.lt.s32.totalorder %s273, 3
        %s275 = scalar_select %p274, %s273, 3
        %s276 = smul.addr %s275, 2
        %s277 = scalar_lea.vmem %s0, %s276
        %s278 = smul.u32 2, %s21
        %s279 = smul.u32 2, %s21
        %v280 = vld [vmem:[%s277] sm:$0xf]
        %v281 = vlaneseq
        %v282 = vshrl.u32 %v281, 7
        %v283 = vadd.s32 %v282, 8
        %v284 = vadd.s32 %v282, 16
        %v285 = vadd.s32 %v282, 24
        %v286 = vlaneseq
        %v287 = vshrl.u32 %v286, 7
        %v288 = vsub.s32 0, %v287
        %v289 = vrot.slane %v280, %v288
        %v290 = vlaneseq
        %v291 = vshrl.u32 %v290, 7
        %v292 = vsub.s32 2, %v291
        %v293 = vrot.slane %v280, %v292
        %v294 = vlaneseq
        %v295 = vshrl.u32 %v294, 7
        %v296 = vsub.s32 0, %v295
        %v297 = vrot.slane %v289, %v296
        %v298 = vlaneseq
        %v299 = vshrl.u32 %v298, 7
        %v300 = vsub.s32 0, %v299
        %v301 = vrot.slane %v293, %v300
        %vm302 = vcmp.eq.s32.totalorder %v282, %v297
        %vm303 = vcmp.eq.s32.totalorder %v282, %v301
        %vm304 = vcmp.eq.s32.totalorder %v283, %v297
        %vm305 = vcmp.eq.s32.totalorder %v283, %v301
        %vm306 = vcmp.eq.s32.totalorder %v284, %v297
        %vm307 = vcmp.eq.s32.totalorder %v284, %v301
        %vm308 = vcmp.eq.s32.totalorder %v285, %v297
        %vm309 = vcmp.eq.s32.totalorder %v285, %v301
        %v310 = vadd.s32 %v280, 16
        %v311 = vlaneseq
        %v312 = vshrl.u32 %v311, 7
        %v313 = vsub.s32 1, %v312
        %v314 = vrot.slane %v310, %v313
        %v315 = vlaneseq
        %v316 = vshrl.u32 %v315, 7
        %v317 = vsub.s32 3, %v316
        %v318 = vrot.slane %v310, %v317
        %v319 = vlaneseq
        %v320 = vshrl.u32 %v319, 7
        %v321 = vsub.s32 1, %v320
        %v322 = vrot.slane %v314, %v321
        %v323 = vlaneseq
        %v324 = vshrl.u32 %v323, 7
        %v325 = vsub.s32 1, %v324
        %v326 = vrot.slane %v318, %v325
        %vm327 = vcmp.eq.s32.totalorder %v282, %v322
        %vm328 = vcmp.eq.s32.totalorder %v282, %v326
        %vm329 = vcmp.eq.s32.totalorder %v283, %v322
        %vm330 = vcmp.eq.s32.totalorder %v283, %v326
        %vm331 = vcmp.eq.s32.totalorder %v284, %v322
        %vm332 = vcmp.eq.s32.totalorder %v284, %v326
        %vm333 = vcmp.eq.s32.totalorder %v285, %v322
        %vm334 = vcmp.eq.s32.totalorder %v285, %v326
        %vm335 = vmor %vm302, %vm327
        %vm336 = vmor %vm303, %vm328
        %vm337 = vmor %vm304, %vm329
        %vm338 = vmor %vm305, %vm330
        %vm339 = vmor %vm306, %vm331
        %vm340 = vmor %vm307, %vm332
        %vm341 = vmor %vm308, %vm333
        %vm342 = vmor %vm309, %vm334
        %v343 = vsel %vm335, 1.0, 0.0
        %v344 = vsel %vm336, 1.0, 0.0
        %v345 = vsel %vm337, 1.0, 0.0
        %v346 = vsel %vm338, 1.0, 0.0
        %v347 = vsel %vm339, 1.0, 0.0
        %v348 = vsel %vm340, 1.0, 0.0
        %v349 = vsel %vm341, 1.0, 0.0
        %v350 = vsel %vm342, 1.0, 0.0
        %v351 = vld [vmem:[%s1] sm:$0xff]
        %v352 = vld [vmem:[%s1 + $0x8] sm:$0xff]
        %v353 = vld [vmem:[%s1 + $0x10] sm:$0xff]
        %v354 = vld [vmem:[%s1 + $0x18] sm:$0xff]
        %v355 = vld [vmem:[%s1 + $0x20] sm:$0xff]
        %v356 = vld [vmem:[%s1 + $0x28] sm:$0xff]
        %v357 = vld [vmem:[%s1 + $0x30] sm:$0xff]
        %v358 = vld [vmem:[%s1 + $0x38] sm:$0xff]
        %vm359 = vcmask 261120
        %v361 = vsel %vm359, %v351, 0
        %v364 = vsel %vm359, %v352, 0
        %v367 = vsel %vm359, %v353, 0
        %v370 = vsel %vm359, %v354, 0
        %v373 = vsel %vm359, %v355, 0
        %v376 = vsel %vm359, %v356, 0
        %v379 = vsel %vm359, %v357, 0
        %v382 = vsel %vm359, %v358, 0
        %384 = vmatprep.subr.mxu0 0.0
        %385 = vmatpush1.msra.mxu0 0.0
        %386 = vmatprep.subr.mxu0 0.0
        %387 = vmatpush1.msra.mxu0 0.0
        %388 = vmatprep.subr.mxu0 0.0
        %389 = vmatpush1.msra.mxu0 0.0
        %390 = vmatprep.subr.mxu0 0.0
        %391 = vmatpush1.msra.mxu0 0.0
        %392 = vmatprep.subr.mxu0 0.0
        %393 = vmatpush1.msra.mxu0 0.0
        %394 = vmatprep.subr.mxu0 0.0
        %395 = vmatpush1.msra.mxu0 0.0
        %396 = vmatprep.subr.mxu0 0.0
        %397 = vmatpush1.msra.mxu0 0.0
        %398 = vmatprep.subr.mxu0 0.0
        %399 = vmatpush1.msra.mxu0 0.0
        %400 = vmatprep.subr.mxu0 0.0
        %401 = vmatpush1.msra.mxu0 0.0
        %402 = vmatprep.subr.mxu0 0.0
        %403 = vmatpush1.msra.mxu0 0.0
        %404 = vmatprep.subr.mxu0 0.0
        %405 = vmatpush1.msra.mxu0 0.0
        %406 = vmatprep.subr.mxu0 0.0
        %407 = vmatpush1.msra.mxu0 0.0
        %408 = vmatprep.subr.mxu0 %v350
        %409 = vmatpush1.msra.mxu0 %v349
        %410 = vmatprep.subr.mxu0 %v348
        %411 = vmatpush1.msra.mxu0 %v347
        %412 = vmatprep.subr.mxu0 %v346
        %413 = vmatpush1.msra.mxu0 %v345
        %414 = vmatprep.subr.mxu0 %v344
        %415 = vmatpush1.msra.mxu0 %v343
        %416 = vmatprep.subr.mxu0 0.0
        %417 = vmatpush2.msra.mxu0 0.0
        %418 = vmatprep.subr.mxu0 0.0
        %419 = vmatpush2.msra.mxu0 0.0
        %420 = vmatprep.subr.mxu0 0.0
        %421 = vmatpush2.msra.mxu0 0.0
        %422 = vmatprep.subr.mxu0 0.0
        %423 = vmatpush2.msra.mxu0 0.0
        %424 = vmatprep.subr.mxu0 0.0
        %425 = vmatpush2.msra.mxu0 0.0
        %426 = vmatprep.subr.mxu0 0.0
        %427 = vmatpush2.msra.mxu0 0.0
        %428 = vmatprep.subr.mxu0 0.0
        %429 = vmatpush2.msra.mxu0 0.0
        %430 = vmatprep.subr.mxu0 0.0
        %431 = vmatpush2.msra.mxu0 0.0
        %432 = vmatprep.subr.mxu0 0.0
        %433 = vmatpush2.msra.mxu0 0.0
        %434 = vmatprep.subr.mxu0 0.0
        %435 = vmatpush2.msra.mxu0 0.0
        %436 = vmatprep.subr.mxu0 0.0
        %437 = vmatpush2.msra.mxu0 0.0
        %438 = vmatprep.subr.mxu0 0.0
        %439 = vmatpush2.msra.mxu0 0.0
        %440 = vmatprep.subr.mxu0 0.0
        %441 = vmatpush2.msra.mxu0 0.0
        %442 = vmatprep.subr.mxu0 0.0
        %443 = vmatpush2.msra.mxu0 0.0
        %444 = vmatprep.subr.mxu0 0.0
        %445 = vmatpush2.msra.mxu0 0.0
        %446 = vmatprep.subr.mxu0 0.0
        %447 = vmatpush2.msra.mxu0 0.0
        %448 = vmatprep.mubr.f32.mxu0 0.0
        %449 = vmatmul.mubr.f32.gmra.mxu0 %v361
        %v450 = vpop.f32.mrf.mxu0
        %v451 = vadd.f32 0.0, %v450
        %v452 = vpop.f32.mrf.mxu0
        %v453 = vadd.f32 0.0, %v452
        %454 = vmatprep.mubr.f32.mxu0 0.0
        %455 = vmatmul.mubr.f32.gmra.mxu0 %v364
        %v456 = vpop.f32.mrf.mxu0
        %v457 = vadd.f32 0.0, %v456
        %v458 = vpop.f32.mrf.mxu0
        %v459 = vadd.f32 0.0, %v458
        %460 = vmatprep.mubr.f32.mxu0 0.0
        %461 = vmatmul.mubr.f32.gmra.mxu0 %v367
        %v462 = vpop.f32.mrf.mxu0
        %v463 = vadd.f32 0.0, %v462
        %v464 = vpop.f32.mrf.mxu0
        %v465 = vadd.f32 0.0, %v464
        %466 = vmatprep.mubr.f32.mxu0 0.0
        %467 = vmatmul.mubr.f32.gmra.mxu0 %v370
        %v468 = vpop.f32.mrf.mxu0
        %v469 = vadd.f32 0.0, %v468
        %v470 = vpop.f32.mrf.mxu0
        %v471 = vadd.f32 0.0, %v470
        %472 = vmatprep.mubr.f32.mxu0 0.0
        %473 = vmatmul.mubr.f32.gmra.mxu0 %v373
        %v474 = vpop.f32.mrf.mxu0
        %v475 = vadd.f32 0.0, %v474
        %v476 = vpop.f32.mrf.mxu0
        %v477 = vadd.f32 0.0, %v476
        %478 = vmatprep.mubr.f32.mxu0 0.0
        %479 = vmatmul.mubr.f32.gmra.mxu0 %v376
        %v480 = vpop.f32.mrf.mxu0
        %v481 = vadd.f32 0.0, %v480
        %v482 = vpop.f32.mrf.mxu0
        %v483 = vadd.f32 0.0, %v482
        %484 = vmatprep.mubr.f32.mxu0 0.0
        %485 = vmatmul.mubr.f32.gmra.mxu0 %v379
        %v486 = vpop.f32.mrf.mxu0
        %v487 = vadd.f32 0.0, %v486
        %v488 = vpop.f32.mrf.mxu0
        %v489 = vadd.f32 0.0, %v488
        %490 = vmatprep.mubr.f32.mxu0 0.0
        %491 = vmatmul.mubr.f32.gmra.mxu0 %v382
        %v492 = vpop.f32.mrf.mxu0
        %v493 = vadd.f32 0.0, %v492
        %v494 = vpop.f32.mrf.mxu0
        %v495 = vadd.f32 0.0, %v494
        %496 = vdwg.mxu0
        %v497 = vld [vmem:[%s2] sm:$0xff]
        %v498 = vld [vmem:[%s2 + $0x8] sm:$0xff]
        %v499 = vld [vmem:[%s2 + $0x10] sm:$0xff]
        %v500 = vld [vmem:[%s2 + $0x18] sm:$0xff]
        %v501 = vld [vmem:[%s2 + $0x20] sm:$0xff]
        %v502 = vld [vmem:[%s2 + $0x28] sm:$0xff]
        %v503 = vld [vmem:[%s2 + $0x30] sm:$0xff]
        %v504 = vld [vmem:[%s2 + $0x38] sm:$0xff]
        %v505 = vld [vmem:[%s3] sm:$0xff]
        %v506 = vld [vmem:[%s3 + $0x8] sm:$0xff]
        %v507 = vld [vmem:[%s3 + $0x10] sm:$0xff]
        %v508 = vld [vmem:[%s3 + $0x18] sm:$0xff]
        %v509 = vld [vmem:[%s3 + $0x20] sm:$0xff]
        %v510 = vld [vmem:[%s3 + $0x28] sm:$0xff]
        %v511 = vld [vmem:[%s3 + $0x30] sm:$0xff]
        %v512 = vld [vmem:[%s3 + $0x38] sm:$0xff]
        %514 = vset.pattern.permute.xlu0 0
        %515 = vperm.xlu0 %514, %v505
        %v516 = vpop.permute.xlu0 %515
        %519 = vset.pattern.permute.xlu0 0
        %520 = vperm.xlu0 %519, %v506
        %v521 = vpop.permute.xlu0 %520
        %524 = vset.pattern.permute.xlu0 0
        %525 = vperm.xlu0 %524, %v507
        %v526 = vpop.permute.xlu0 %525
        %529 = vset.pattern.permute.xlu0 0
        %530 = vperm.xlu0 %529, %v508
        %v531 = vpop.permute.xlu0 %530
        %534 = vset.pattern.permute.xlu0 0
        %535 = vperm.xlu0 %534, %v509
        %v536 = vpop.permute.xlu0 %535
        %539 = vset.pattern.permute.xlu0 0
        %540 = vperm.xlu0 %539, %v510
        %v541 = vpop.permute.xlu0 %540
        %544 = vset.pattern.permute.xlu0 0
        %545 = vperm.xlu0 %544, %v511
        %v546 = vpop.permute.xlu0 %545
        %549 = vset.pattern.permute.xlu0 0
        %550 = vperm.xlu0 %549, %v512
        %v551 = vpop.permute.xlu0 %550
        %vm553 = vcmask 523264
        %v555 = vsel %vm553, %v497, 0
        %v558 = vsel %vm553, %v498, 0
        %v561 = vsel %vm553, %v499, 0
        %v564 = vsel %vm553, %v500, 0
        %v567 = vsel %vm553, %v501, 0
        %v570 = vsel %vm553, %v502, 0
        %v573 = vsel %vm553, %v503, 0
        %v576 = vsel %vm553, %v504, 0
        %578 = vmatprep.subr.mxu0 0.0
        %579 = vmatpush1.msra.mxu0 0.0
        %580 = vmatprep.subr.mxu0 0.0
        %581 = vmatpush1.msra.mxu0 0.0
        %582 = vmatprep.subr.mxu0 0.0
        %583 = vmatpush1.msra.mxu0 0.0
        %584 = vmatprep.subr.mxu0 0.0
        %585 = vmatpush1.msra.mxu0 0.0
        %586 = vmatprep.subr.mxu0 0.0
        %587 = vmatpush1.msra.mxu0 0.0
        %588 = vmatprep.subr.mxu0 0.0
        %589 = vmatpush1.msra.mxu0 0.0
        %590 = vmatprep.subr.mxu0 0.0
        %591 = vmatpush1.msra.mxu0 0.0
        %592 = vmatprep.subr.mxu0 0.0
        %593 = vmatpush1.msra.mxu0 0.0
        %594 = vmatprep.subr.mxu0 %v495
        %595 = vmatpush1.msra.mxu0 %v493
        %596 = vmatprep.subr.mxu0 %v489
        %597 = vmatpush1.msra.mxu0 %v487
        %598 = vmatprep.subr.mxu0 %v483
        %599 = vmatpush1.msra.mxu0 %v481
        %600 = vmatprep.subr.mxu0 %v477
        %601 = vmatpush1.msra.mxu0 %v475
        %602 = vmatprep.subr.mxu0 %v471
        %603 = vmatpush1.msra.mxu0 %v469
        %604 = vmatprep.subr.mxu0 %v465
        %605 = vmatpush1.msra.mxu0 %v463
        %606 = vmatprep.subr.mxu0 %v459
        %607 = vmatpush1.msra.mxu0 %v457
        %608 = vmatprep.subr.mxu0 %v453
        %609 = vmatpush1.msra.mxu0 %v451
        %610 = vmatprep.subr.mxu0 0.0
        %611 = vmatpush2.msra.mxu0 0.0
        %612 = vmatprep.subr.mxu0 0.0
        %613 = vmatpush2.msra.mxu0 0.0
        %614 = vmatprep.subr.mxu0 0.0
        %615 = vmatpush2.msra.mxu0 0.0
        %616 = vmatprep.subr.mxu0 0.0
        %617 = vmatpush2.msra.mxu0 0.0
        %618 = vmatprep.subr.mxu0 0.0
        %619 = vmatpush2.msra.mxu0 0.0
        %620 = vmatprep.subr.mxu0 0.0
        %621 = vmatpush2.msra.mxu0 0.0
        %622 = vmatprep.subr.mxu0 0.0
        %623 = vmatpush2.msra.mxu0 0.0
        %624 = vmatprep.subr.mxu0 0.0
        %625 = vmatpush2.msra.mxu0 0.0
        %626 = vmatprep.subr.mxu0 0.0
        %627 = vmatpush2.msra.mxu0 0.0
        %628 = vmatprep.subr.mxu0 0.0
        %629 = vmatpush2.msra.mxu0 0.0
        %630 = vmatprep.subr.mxu0 0.0
        %631 = vmatpush2.msra.mxu0 0.0
        %632 = vmatprep.subr.mxu0 0.0
        %633 = vmatpush2.msra.mxu0 0.0
        %634 = vmatprep.subr.mxu0 0.0
        %635 = vmatpush2.msra.mxu0 0.0
        %636 = vmatprep.subr.mxu0 0.0
        %637 = vmatpush2.msra.mxu0 0.0
        %638 = vmatprep.subr.mxu0 0.0
        %639 = vmatpush2.msra.mxu0 0.0
        %640 = vmatprep.subr.mxu0 0.0
        %641 = vmatpush2.msra.mxu0 0.0
        %642 = vmatprep.mubr.f32.mxu0 0.0
        %643 = vmatmul.mubr.f32.gmra.mxu0 %v555
        %v644 = vpop.f32.mrf.mxu0
        %v645 = vadd.f32 %v516, %v644
        %v646 = vpop.f32.mrf.mxu0
        %v647 = vadd.f32 %v516, %v646
        %648 = vmatprep.mubr.f32.mxu0 0.0
        %649 = vmatmul.mubr.f32.gmra.mxu0 %v558
        %v650 = vpop.f32.mrf.mxu0
        %v651 = vadd.f32 %v521, %v650
        %v652 = vpop.f32.mrf.mxu0
        %v653 = vadd.f32 %v521, %v652
        %654 = vmatprep.mubr.f32.mxu0 0.0
        %655 = vmatmul.mubr.f32.gmra.mxu0 %v561
        %v656 = vpop.f32.mrf.mxu0
        %v657 = vadd.f32 %v526, %v656
        %v658 = vpop.f32.mrf.mxu0
        %v659 = vadd.f32 %v526, %v658
        %660 = vmatprep.mubr.f32.mxu0 0.0
        %661 = vmatmul.mubr.f32.gmra.mxu0 %v564
        %v662 = vpop.f32.mrf.mxu0
        %v663 = vadd.f32 %v531, %v662
        %v664 = vpop.f32.mrf.mxu0
        %v665 = vadd.f32 %v531, %v664
        %666 = vmatprep.mubr.f32.mxu0 0.0
        %667 = vmatmul.mubr.f32.gmra.mxu0 %v567
        %v668 = vpop.f32.mrf.mxu0
        %v669 = vadd.f32 %v536, %v668
        %v670 = vpop.f32.mrf.mxu0
        %v671 = vadd.f32 %v536, %v670
        %672 = vmatprep.mubr.f32.mxu0 0.0
        %673 = vmatmul.mubr.f32.gmra.mxu0 %v570
        %v674 = vpop.f32.mrf.mxu0
        %v675 = vadd.f32 %v541, %v674
        %v676 = vpop.f32.mrf.mxu0
        %v677 = vadd.f32 %v541, %v676
        %678 = vmatprep.mubr.f32.mxu0 0.0
        %679 = vmatmul.mubr.f32.gmra.mxu0 %v573
        %v680 = vpop.f32.mrf.mxu0
        %v681 = vadd.f32 %v546, %v680
        %v682 = vpop.f32.mrf.mxu0
        %v683 = vadd.f32 %v546, %v682
        %684 = vmatprep.mubr.f32.mxu0 0.0
        %685 = vmatmul.mubr.f32.gmra.mxu0 %v576
        %v686 = vpop.f32.mrf.mxu0
        %v687 = vadd.f32 %v551, %v686
        %v688 = vpop.f32.mrf.mxu0
        %v689 = vadd.f32 %v551, %v688
        %690 = vdwg.mxu0
        %v691 = vmax.f32 %v645, 0.0
        %v692 = vmax.f32 %v647, 0.0
        %v693 = vmax.f32 %v651, 0.0
        %v694 = vmax.f32 %v653, 0.0
        %v695 = vmax.f32 %v657, 0.0
        %v696 = vmax.f32 %v659, 0.0
        %v697 = vmax.f32 %v663, 0.0
        %v698 = vmax.f32 %v665, 0.0
        %v699 = vmax.f32 %v669, 0.0
        %v700 = vmax.f32 %v671, 0.0
        %v701 = vmax.f32 %v675, 0.0
        %v702 = vmax.f32 %v677, 0.0
        %v703 = vmax.f32 %v681, 0.0
        %v704 = vmax.f32 %v683, 0.0
        %v705 = vmax.f32 %v687, 0.0
        %v706 = vmax.f32 %v689, 0.0
        %v707 = vld [vmem:[%s5] sm:$0xff]
        %v708 = vld [vmem:[%s5 + $0x8] sm:$0xff]
        %v709 = vld [vmem:[%s5 + $0x10] sm:$0xff]
        %v710 = vld [vmem:[%s5 + $0x18] sm:$0xff]
        %v711 = vld [vmem:[%s6] sm:$0xff]
        %v712 = vld [vmem:[%s6 + $0x8] sm:$0xff]
        %v713 = vld [vmem:[%s6 + $0x10] sm:$0xff]
        %v714 = vld [vmem:[%s6 + $0x18] sm:$0xff]
        %v715 = vadd.f32 %v691, %v693
        %v716 = vadd.f32 %v715, %v695
        %v717 = vadd.f32 %v716, %v697
        %v718 = vrot.slane %v717, 4
        %v719 = vadd.f32 %v717, %v718
        %v720 = vrot.slane %v719, 2
        %v721 = vadd.f32 %v719, %v720
        %v722 = vrot.slane %v721, 1
        %v723 = vadd.f32 %v721, %v722
        %v724 = vadd.f32 %v692, %v694
        %v725 = vadd.f32 %v724, %v696
        %v726 = vadd.f32 %v725, %v698
        %v727 = vrot.slane %v726, 4
        %v728 = vadd.f32 %v726, %v727
        %v729 = vrot.slane %v728, 2
        %v730 = vadd.f32 %v728, %v729
        %v731 = vrot.slane %v730, 1
        %v732 = vadd.f32 %v730, %v731
        %v733 = vrcp.pop 32.0
        %v734 = vmul.f32 %v723, %v733
        %v735 = vmul.f32 %v732, %v733
        %v736 = vsub.f32 %v691, %v734
        %v737 = vsub.f32 %v692, %v735
        %v738 = vsub.f32 %v693, %v734
        %v739 = vsub.f32 %v694, %v735
        %v740 = vsub.f32 %v695, %v734
        %v741 = vsub.f32 %v696, %v735
        %v742 = vsub.f32 %v697, %v734
        %v743 = vsub.f32 %v698, %v735
        %v744 = vmul.f32 %v736, %v736
        %v745 = vmul.f32 %v737, %v737
        %v746 = vmul.f32 %v738, %v738
        %v747 = vmul.f32 %v739, %v739
        %v748 = vmul.f32 %v740, %v740
        %v749 = vmul.f32 %v741, %v741
        %v750 = vmul.f32 %v742, %v742
        %v751 = vmul.f32 %v743, %v743
        %v752 = vadd.f32 %v744, %v746
        %v753 = vadd.f32 %v752, %v748
        %v754 = vadd.f32 %v753, %v750
        %v755 = vrot.slane %v754, 4
        %v756 = vadd.f32 %v754, %v755
        %v757 = vrot.slane %v756, 2
        %v758 = vadd.f32 %v756, %v757
        %v759 = vrot.slane %v758, 1
        %v760 = vadd.f32 %v758, %v759
        %v761 = vadd.f32 %v745, %v747
        %v762 = vadd.f32 %v761, %v749
        %v763 = vadd.f32 %v762, %v751
        %v764 = vrot.slane %v763, 4
        %v765 = vadd.f32 %v763, %v764
        %v766 = vrot.slane %v765, 2
        %v767 = vadd.f32 %v765, %v766
        %v768 = vrot.slane %v767, 1
        %v769 = vadd.f32 %v767, %v768
        %v770 = vmul.f32 %v760, %v733
        %v771 = vmul.f32 %v769, %v733
        %v772 = vadd.f32 %v770, 1e-05
        %v773 = vadd.f32 %v771, 1e-05
        %v774 = vrsqrt.pop %v772
        %v775 = vrsqrt.pop %v773
        %v776 = vmul.f32 %v736, %v774
        %v777 = vmul.f32 %v737, %v775
        %v778 = vmul.f32 %v738, %v774
        %v779 = vmul.f32 %v739, %v775
        %v780 = vmul.f32 %v740, %v774
        %v781 = vmul.f32 %v741, %v775
        %v782 = vmul.f32 %v742, %v774
        %v783 = vmul.f32 %v743, %v775
        %785 = vset.pattern.permute.xlu0 0
        %786 = vperm.xlu0 %785, %v707
        %v787 = vpop.permute.xlu0 %786
        %790 = vset.pattern.permute.xlu0 0
        %791 = vperm.xlu0 %790, %v708
        %v792 = vpop.permute.xlu0 %791
        %795 = vset.pattern.permute.xlu0 0
        %796 = vperm.xlu0 %795, %v709
        %v797 = vpop.permute.xlu0 %796
        %800 = vset.pattern.permute.xlu0 0
        %801 = vperm.xlu0 %800, %v710
        %v802 = vpop.permute.xlu0 %801
        %v804 = vmul.f32 %v776, %v787
        %v805 = vmul.f32 %v777, %v787
        %v806 = vmul.f32 %v778, %v792
        %v807 = vmul.f32 %v779, %v792
        %v808 = vmul.f32 %v780, %v797
        %v809 = vmul.f32 %v781, %v797
        %v810 = vmul.f32 %v782, %v802
        %v811 = vmul.f32 %v783, %v802
        %813 = vset.pattern.permute.xlu0 0
        %814 = vperm.xlu0 %813, %v711
        %v815 = vpop.permute.xlu0 %814
        %818 = vset.pattern.permute.xlu0 0
        %819 = vperm.xlu0 %818, %v712
        %v820 = vpop.permute.xlu0 %819
        %823 = vset.pattern.permute.xlu0 0
        %824 = vperm.xlu0 %823, %v713
        %v825 = vpop.permute.xlu0 %824
        %828 = vset.pattern.permute.xlu0 0
        %829 = vperm.xlu0 %828, %v714
        %v830 = vpop.permute.xlu0 %829
        %v832 = vadd.f32 %v804, %v815
        %v833 = vadd.f32 %v805, %v815
        %v834 = vadd.f32 %v806, %v820
        %v835 = vadd.f32 %v807, %v820
        %v836 = vadd.f32 %v808, %v825
        %v837 = vadd.f32 %v809, %v825
        %v838 = vadd.f32 %v810, %v830
        %v839 = vadd.f32 %v811, %v830
        %v840 = vadd.f32 %v699, %v701
        %v841 = vadd.f32 %v840, %v703
        %v842 = vadd.f32 %v841, %v705
        %v843 = vrot.slane %v842, 4
        %v844 = vadd.f32 %v842, %v843
        %v845 = vrot.slane %v844, 2
        %v846 = vadd.f32 %v844, %v845
        %v847 = vrot.slane %v846, 1
        %v848 = vadd.f32 %v846, %v847
        %v849 = vadd.f32 %v700, %v702
        %v850 = vadd.f32 %v849, %v704
        %v851 = vadd.f32 %v850, %v706
        %v852 = vrot.slane %v851, 4
        %v853 = vadd.f32 %v851, %v852
        %v854 = vrot.slane %v853, 2
        %v855 = vadd.f32 %v853, %v854
        %v856 = vrot.slane %v855, 1
        %v857 = vadd.f32 %v855, %v856
        %v858 = vmul.f32 %v848, %v733
        %v859 = vmul.f32 %v857, %v733
        %v860 = vsub.f32 %v699, %v858
        %v861 = vsub.f32 %v700, %v859
        %v862 = vsub.f32 %v701, %v858
        %v863 = vsub.f32 %v702, %v859
        %v864 = vsub.f32 %v703, %v858
        %v865 = vsub.f32 %v704, %v859
        %v866 = vsub.f32 %v705, %v858
        %v867 = vsub.f32 %v706, %v859
        %v868 = vmul.f32 %v860, %v860
        %v869 = vmul.f32 %v861, %v861
        %v870 = vmul.f32 %v862, %v862
        %v871 = vmul.f32 %v863, %v863
        %v872 = vmul.f32 %v864, %v864
        %v873 = vmul.f32 %v865, %v865
        %v874 = vmul.f32 %v866, %v866
        %v875 = vmul.f32 %v867, %v867
        %v876 = vadd.f32 %v868, %v870
        %v877 = vadd.f32 %v876, %v872
        %v878 = vadd.f32 %v877, %v874
        %v879 = vrot.slane %v878, 4
        %v880 = vadd.f32 %v878, %v879
        %v881 = vrot.slane %v880, 2
        %v882 = vadd.f32 %v880, %v881
        %v883 = vrot.slane %v882, 1
        %v884 = vadd.f32 %v882, %v883
        %v885 = vadd.f32 %v869, %v871
        %v886 = vadd.f32 %v885, %v873
        %v887 = vadd.f32 %v886, %v875
        %v888 = vrot.slane %v887, 4
        %v889 = vadd.f32 %v887, %v888
        %v890 = vrot.slane %v889, 2
        %v891 = vadd.f32 %v889, %v890
        %v892 = vrot.slane %v891, 1
        %v893 = vadd.f32 %v891, %v892
        %v894 = vmul.f32 %v884, %v733
        %v895 = vmul.f32 %v893, %v733
        %v896 = vadd.f32 %v894, 1e-05
        %v897 = vadd.f32 %v895, 1e-05
        %v898 = vrsqrt.pop %v896
        %v899 = vrsqrt.pop %v897
        %v900 = vmul.f32 %v860, %v898
        %v901 = vmul.f32 %v861, %v899
        %v902 = vmul.f32 %v862, %v898
        %v903 = vmul.f32 %v863, %v899
        %v904 = vmul.f32 %v864, %v898
        %v905 = vmul.f32 %v865, %v899
        %v906 = vmul.f32 %v866, %v898
        %v907 = vmul.f32 %v867, %v899
        %v908 = vmul.f32 %v900, %v787
        %v909 = vmul.f32 %v901, %v787
        %v910 = vmul.f32 %v902, %v792
        %v911 = vmul.f32 %v903, %v792
        %v912 = vmul.f32 %v904, %v797
        %v913 = vmul.f32 %v905, %v797
        %v914 = vmul.f32 %v906, %v802
        %v915 = vmul.f32 %v907, %v802
        %v916 = vadd.f32 %v908, %v815
        %v917 = vadd.f32 %v909, %v815
        %v918 = vadd.f32 %v910, %v820
        %v919 = vadd.f32 %v911, %v820
        %v920 = vadd.f32 %v912, %v825
        %v921 = vadd.f32 %v913, %v825
        %v922 = vadd.f32 %v914, %v830
        %v923 = vadd.f32 %v915, %v830
        %v924 = vld [vmem:[%s4] sm:$0xff]
        %v925 = vld [vmem:[%s4 + $0x8] sm:$0xff]
        %v926 = vld [vmem:[%s4 + $0x10] sm:$0xff]
        %v927 = vld [vmem:[%s4 + $0x18] sm:$0xff]
        %v929 = vsel %vm359, %v924, 0
        %v932 = vsel %vm359, %v925, 0
        %v935 = vsel %vm359, %v926, 0
        %v938 = vsel %vm359, %v927, 0
        %940 = vmatprep.subr.mxu0 0.0
        %941 = vmatpush1.msra.mxu0 0.0
        %942 = vmatprep.subr.mxu0 0.0
        %943 = vmatpush1.msra.mxu0 0.0
        %944 = vmatprep.subr.mxu0 0.0
        %945 = vmatpush1.msra.mxu0 0.0
        %946 = vmatprep.subr.mxu0 0.0
        %947 = vmatpush1.msra.mxu0 0.0
        %948 = vmatprep.subr.mxu0 0.0
        %949 = vmatpush1.msra.mxu0 0.0
        %950 = vmatprep.subr.mxu0 0.0
        %951 = vmatpush1.msra.mxu0 0.0
        %952 = vmatprep.subr.mxu0 0.0
        %953 = vmatpush1.msra.mxu0 0.0
        %954 = vmatprep.subr.mxu0 0.0
        %955 = vmatpush1.msra.mxu0 0.0
        %956 = vmatprep.subr.mxu0 0.0
        %957 = vmatpush1.msra.mxu0 0.0
        %958 = vmatprep.subr.mxu0 0.0
        %959 = vmatpush1.msra.mxu0 0.0
        %960 = vmatprep.subr.mxu0 0.0
        %961 = vmatpush1.msra.mxu0 0.0
        %962 = vmatprep.subr.mxu0 0.0
        %963 = vmatpush1.msra.mxu0 0.0
        %964 = vmatprep.subr.mxu0 %v839
        %965 = vmatpush1.msra.mxu0 %v838
        %966 = vmatprep.subr.mxu0 %v837
        %967 = vmatpush1.msra.mxu0 %v836
        %968 = vmatprep.subr.mxu0 %v835
        %969 = vmatpush1.msra.mxu0 %v834
        %970 = vmatprep.subr.mxu0 %v833
        %971 = vmatpush1.msra.mxu0 %v832
        %972 = vmatprep.subr.mxu0 0.0
        %973 = vmatpush2.msra.mxu0 0.0
        %974 = vmatprep.subr.mxu0 0.0
        %975 = vmatpush2.msra.mxu0 0.0
        %976 = vmatprep.subr.mxu0 0.0
        %977 = vmatpush2.msra.mxu0 0.0
        %978 = vmatprep.subr.mxu0 0.0
        %979 = vmatpush2.msra.mxu0 0.0
        %980 = vmatprep.subr.mxu0 0.0
        %981 = vmatpush2.msra.mxu0 0.0
        %982 = vmatprep.subr.mxu0 0.0
        %983 = vmatpush2.msra.mxu0 0.0
        %984 = vmatprep.subr.mxu0 0.0
        %985 = vmatpush2.msra.mxu0 0.0
        %986 = vmatprep.subr.mxu0 0.0
        %987 = vmatpush2.msra.mxu0 0.0
        %988 = vmatprep.subr.mxu0 0.0
        %989 = vmatpush2.msra.mxu0 0.0
        %990 = vmatprep.subr.mxu0 0.0
        %991 = vmatpush2.msra.mxu0 0.0
        %992 = vmatprep.subr.mxu0 0.0
        %993 = vmatpush2.msra.mxu0 0.0
        %994 = vmatprep.subr.mxu0 0.0
        %995 = vmatpush2.msra.mxu0 0.0
        %996 = vmatprep.subr.mxu0 0.0
        %997 = vmatpush2.msra.mxu0 0.0
        %998 = vmatprep.subr.mxu0 0.0
        %999 = vmatpush2.msra.mxu0 0.0
        %1000 = vmatprep.subr.mxu0 0.0
        %1001 = vmatpush2.msra.mxu0 0.0
        %1002 = vmatprep.subr.mxu0 0.0
        %1003 = vmatpush2.msra.mxu0 0.0
        %1004 = vmatprep.mubr.f32.mxu0 0.0
        %1005 = vmatmul.mubr.f32.gmra.mxu0 %v929
        %v1006 = vpop.f32.mrf.mxu0
        %v1007 = vadd.f32 0.0, %v1006
        %v1008 = vpop.f32.mrf.mxu0
        %v1009 = vadd.f32 0.0, %v1008
        %1010 = vmatprep.mubr.f32.mxu0 0.0
        %1011 = vmatmul.mubr.f32.gmra.mxu0 %v932
        %v1012 = vpop.f32.mrf.mxu0
        %v1013 = vadd.f32 0.0, %v1012
        %v1014 = vpop.f32.mrf.mxu0
        %v1015 = vadd.f32 0.0, %v1014
        %1016 = vmatprep.mubr.f32.mxu0 0.0
        %1017 = vmatmul.mubr.f32.gmra.mxu0 %v935
        %v1018 = vpop.f32.mrf.mxu0
        %v1019 = vadd.f32 0.0, %v1018
        %v1020 = vpop.f32.mrf.mxu0
        %v1021 = vadd.f32 0.0, %v1020
        %1022 = vmatprep.mubr.f32.mxu0 0.0
        %1023 = vmatmul.mubr.f32.gmra.mxu0 %v938
        %v1024 = vpop.f32.mrf.mxu0
        %v1025 = vadd.f32 0.0, %v1024
        %v1026 = vpop.f32.mrf.mxu0
        %v1027 = vadd.f32 0.0, %v1026
        %1028 = vdwg.mxu0
        %v1029 = vmul.f32 %v1007, %v916
        %v1030 = vmul.f32 %v1009, %v917
        %v1031 = vmul.f32 %v1013, %v918
        %v1032 = vmul.f32 %v1015, %v919
        %v1033 = vmul.f32 %v1019, %v920
        %v1034 = vmul.f32 %v1021, %v921
        %v1035 = vmul.f32 %v1025, %v922
        %v1036 = vmul.f32 %v1027, %v923
        %v1037 = vadd.f32 %v1029, %v1031
        %v1038 = vadd.f32 %v1037, %v1033
        %v1039 = vadd.f32 %v1038, %v1035
        %v1040 = vrot.slane %v1039, 4
        %v1041 = vadd.f32 %v1039, %v1040
        %v1042 = vrot.slane %v1041, 2
        %v1043 = vadd.f32 %v1041, %v1042
        %v1044 = vrot.slane %v1043, 1
        %v1045 = vadd.f32 %v1043, %v1044
        %v1046 = vadd.f32 %v1030, %v1032
        %v1047 = vadd.f32 %v1046, %v1034
        %v1048 = vadd.f32 %v1047, %v1036
        %v1049 = vrot.slane %v1048, 4
        %v1050 = vadd.f32 %v1048, %v1049
        %v1051 = vrot.slane %v1050, 2
        %v1052 = vadd.f32 %v1050, %v1051
        %v1053 = vrot.slane %v1052, 1
        %v1054 = vadd.f32 %v1052, %v1053
        %v1057 = vcombine.low %v1045, %v1054
        %v1059 = vunpack.c.l.s4 1966171168
        %v1060 = vunpack.c.0.s8 %v1059
        %v1061 = vlaneseq
        %v1062 = vshrl.u32 %v1061, 7
        %v1063 = vsub.s32 %v1060, %v1062
        %v1064 = vrot.slane %v1057, %v1063
        %v1066 = vunpack.c.l.s4 1966171168
        %v1067 = vunpack.c.0.s8 %v1066
        %v1068 = vlaneseq
        %v1069 = vshrl.u32 %v1068, 7
        %v1070 = vsub.s32 %v1067, %v1069
        %v1071 = vrot.slane %v1064, %v1070
        %v1073 = vlaneseq
        %vm1074 = vcmp.ge.s32.totalorder %v1073, 0
        %vm1075 = vcmp.lt.s32.totalorder %v1073, 256
        %vm1076 = vmand %vm1074, %vm1075
        %1077 = vst.msk [vmem:[%s272] sm:$0x3] %vm1076, %v1071
        %s1078 = sand.u32 %s181, 1
        %s1079 = scalar_lea.sflag [#allocation3], %s1078
        %s1080 = sand.u32 %s181, 1
        %s1081 = smul.addr %s1080, 2
        %s1082 = scalar_lea.vmem [#allocation2], %s1081
        // Predicated region
        $region49: #{tpu_custom_call.1} parent=47 // pred_check
          %p1083 = pneg %p191
        $region50: #{tpu_custom_call.1} parent=47 // pred_check_branch
          %1085 = sbr.rel (%p1083) target = $region52
        $region51: #{tpu_custom_call.1} parent=47 // pred_region
          %s1086 = smul.u32 2, %s21
          %s1088 = ssub.s32 32, 32
          %1089 = vsyncadd %s1079, %s1088
          %s1090 = smul.addr %s1086, 16
          %s1091 = scalar_lea.hbm %s7, %s1090
          %s1093 = sshll.u32 %s1082, 4
          %s1094 = int_to_ptr.vmem [resolvable:$true] %s1093
          %1096 = dma.vmem_to_hbm [thread:$0]  %s1094, 32, %s1091, %s1079
        $region52: #{tpu_custom_call.1} parent=47 // pred_fallthru
          _
      $region48: #{tpu_custom_call.1} parent=5 // pred_fallthru
        _
      %p1097 = scmp.le.s32.totalorder 2, %s16
      // Predicated region
      $region53: #{tpu_custom_call.1} parent=5 // pred_check
        %p1098 = pneg %p1097
      $region54: #{tpu_custom_call.1} parent=5 // pred_check_branch
        %1100 = sbr.rel (%p1098) target = $region56
      $region55: #{tpu_custom_call.1} parent=5 // pred_region
        %s1101 = ssub.s32 %s16, 2
        // Predicated region
        $region57: #{tpu_custom_call.1} parent=55 // pred_check
          %p1102 = pneg %p197
        $region58: #{tpu_custom_call.1} parent=55 // pred_check_branch
          %1104 = sbr.rel (%p1102) target = $region60
        $region59: #{tpu_custom_call.1} parent=55 // pred_region
          %s1105 = sand.u32 %s182, 1
          %s1106 = scalar_lea.sflag [#allocation3], %s1105
          %s1107 = sand.u32 %s182, 1
          %s1108 = smul.addr %s1107, 2
          %s1109 = scalar_lea.vmem [#allocation2], %s1108
          %1110 = dma.done %s1106, 32
        $region60: #{tpu_custom_call.1} parent=55 // pred_fallthru
          _
      $region56: #{tpu_custom_call.1} parent=5 // pred_fallthru
        _
    $region6: #{tpu_custom_call.1} parent=1 // loop_footer
      %s20 = sadd.s32 1, %s16
    $region7: #{tpu_custom_call.1} parent=1 // loop_footer_branch
      %15 = sbr.rel target = $region3
    $region8: #{tpu_custom_call.1} parent=1 // loop_exit
      _
    %1111 = vsyncpa [#allocation3], 1
    %s1112 = scalar_lea.sflag [#allocation3], 1
    %1113 = vsyncpa %s1112, 1

</llo_original>
